<compile_context>
chip_gen: v7x
topology: tpu7x:2x2x1
jax: 0.10.0
libtpu: 0.0.40
codegen_flags: <defaults>
</compile_context>

<pallas_src>
import math

import jax
import jax.numpy as jnp
from jax.experimental import pallas as pl
from jax.experimental.pallas import tpu as pltpu

_GELU_C = math.sqrt(2.0 / math.pi)


def _round_up(x, m):
    return ((x + m - 1) // m) * m


# ---------------------------------------------------------------------------
# Hardware introspection (generation-aware tiles / VMEM caps).
# ---------------------------------------------------------------------------
def _tpu_generation():
    kind = ""
    try:
        kind = jax.devices()[0].device_kind.lower()
    except Exception:
        pass
    if "v5 lite" in kind or "v5lite" in kind or "v5e" in kind:
        return "v5e"
    if "v7" in kind:
        return "v7x"
    if "v6" in kind:
        return "v6e"
    return "other"          # v4 / v5p / interpreter: conservative defaults


def _vmem_capacity_bytes(gen):
    try:
        return int(pltpu.get_tpu_info().vmem_capacity_bytes)
    except Exception:
        return (64 if gen == "v7x" else 128) * 1024 * 1024


_GEN_DEFAULTS = {
    # gen: (row tile tm, hidden tile th, bf16 GELU allowed)
    "v5e":   (256,  512,  False),   # knee ~240 rows; no bf16 VALU/EUP
    "v6e":   (1024, 1024, True),    # knee ~656 rows
    "v7x":   (1024, 1024, True),    # knee ~620 rows per TC
    "other": (512,  512,  False),
}


# ---------------------------------------------------------------------------
# Kernel
# ---------------------------------------------------------------------------
def _make_mlp_kernel(gelu_dtype, use_scratch):
    """Kernel for one (tm, C) row tile x one hidden chunk of size th.

    Grid = (M//tm, H//th).  The H axis (last, "arbitrary") streams a chunk of
    W1's columns / W2's rows per step and reduces into either a f32 scratch
    accumulator (bf16 output) or directly into the resident f32 output block.
    """

    def kernel(x_ref, w1_ref, b1_ref, w2_ref, b2_ref, o_ref, *scratch):
        acc_ref = scratch[0] if use_scratch else o_ref
        k = pl.program_id(1)

        # c_fc partial: (tm, th) on the MXU, f32 accumulate.
        h = jnp.dot(x_ref[...], w1_ref[...], preferred_element_type=jnp.float32)
        h = (h + b1_ref[...]).astype(gelu_dtype)
        # tanh-approx GELU (exact reference formula); bf16 on v6e/v7x (packed
        # VALU/EUP), f32 on v5e / the f32 path.  tanh lowers to the EUP slot.
        h = 0.5 * h * (1.0 + jnp.tanh(_GELU_C * (h + 0.044715 * (h * h * h))))
        # c_proj partial: (tm, C), reduced over hidden chunks in f32.
        p = jnp.dot(h.astype(w2_ref.dtype), w2_ref[...],
                    preferred_element_type=jnp.float32)

        @pl.when(k == 0)
        def _first():           # write the first partial directly (no zero-fill)
            acc_ref[...] = p

        @pl.when(k > 0)
        def _accumulate():
            acc_ref[...] = acc_ref[...] + p

        @pl.when(k == pl.num_programs(1) - 1)
        def _finalize():
            # TODO(synk): dropout omitted (inference / eval mode => identity).
            o_ref[...] = (acc_ref[...] + b2_ref[...]).astype(o_ref.dtype)

    return kernel


# ---------------------------------------------------------------------------
# Wrapper
# ---------------------------------------------------------------------------
def mlp_forward(x, w1, b1, w2, b2, *, tm=None, th=None,
                compute_dtype=jnp.bfloat16):
    """GPT MLP forward. x: (B,T,C); w1: (C,4C); b1: (4C,); w2: (4C,C); b2: (C,)."""
    B, T, C = x.shape
    H = w1.shape[1]
    M = B * T
    out_dtype = x.dtype

    gen = _tpu_generation()
    tm_def, th_def, bf16_gelu_ok = _GEN_DEFAULTS[gen]
    tm_target = tm_def if tm is None else tm
    th_target = th_def if th is None else th

    vmem_cap = _vmem_capacity_bytes(gen)
    vmem_budget = int(0.85 * vmem_cap)   # ~54 MiB on v7x, ~108 MiB on 128 MiB parts

    gelu_dtype = (compute_dtype
                  if (bf16_gelu_ok
                      and jnp.dtype(compute_dtype) == jnp.dtype(jnp.bfloat16))
                  else jnp.float32)
    # f32 output -> accumulate directly into the revisited output block.
    use_scratch = jnp.dtype(out_dtype) != jnp.dtype(jnp.float32)

    # ---- hidden-dim tile: large, lane-aligned; pad H to a multiple of it ----
    th_eff = min(th_target, _round_up(H, 128))
    H_pad = _round_up(H, th_eff)

    # ---- VMEM footprint estimate (incl. GELU intermediate + temporaries) ----
    ib = jnp.dtype(compute_dtype).itemsize
    ob = jnp.dtype(out_dtype).itemsize

    def _est(tm_c, th_c):
        e = 2 * tm_c * C * ib                    # x row tile (double-buffered)
        e += 2 * (C * th_c + th_c * C) * ib      # W1 column chunk + W2 row chunk
        e += 2 * (th_c + C) * 4                  # f32 bias chunks
        e += 2 * tm_c * C * ob                   # output tile
        if use_scratch:
            e += tm_c * C * 4                    # f32 accumulator scratch
        e += 2 * tm_c * th_c * 4                 # f32 GELU intermediate + 1 temp
        return e

    # Shrink the row tile (never below 256) if the estimate exceeds the budget
    # (only relevant for very wide C, e.g. gpt2-xl on v7x's 64 MiB VMEM).
    while tm_target > 256 and _est(tm_target, th_eff) > vmem_budget:
        tm_target //= 2

    tm_eff = min(tm_target, _round_up(M, 8))     # sublane-aligned row tile
    M_pad = _round_up(M, tm_eff)
    grid = (M_pad // tm_eff, H_pad // th_eff)    # reduction (H) axis last

    # ---- host-side layout: flatten rows, pad M/H, cast matmul operands ------
    # TODO(synk): for real deployments carry w1/w2 in bf16 across calls (or
    # cache the cast under jit) so these astype's don't re-stream the weights.
    x2 = x.reshape(M, C)
    if M_pad != M:
        x2 = jnp.pad(x2, ((0, M_pad - M), (0, 0)))
    if x2.dtype != compute_dtype:
        x2 = x2.astype(compute_dtype)
    w1c = w1 if w1.dtype == compute_dtype else w1.astype(compute_dtype)
    w2c = w2 if w2.dtype == compute_dtype else w2.astype(compute_dtype)
    b1f = b1.astype(jnp.float32)
    if H_pad != H:
        # Zero padding: gelu(x@0 + 0) = 0 and the padded W2 rows are zero, so
        # the padded hidden columns contribute nothing to the output.
        w1c = jnp.pad(w1c, ((0, 0), (0, H_pad - H)))
        w2c = jnp.pad(w2c, ((0, H_pad - H), (0, 0)))
        b1f = jnp.pad(b1f, ((0, H_pad - H),))
    b1_2 = b1f.reshape(1, H_pad)                 # biases stay f32 (tiny)
    b2_2 = b2.reshape(1, C).astype(jnp.float32)

    vmem_limit = int(min(max(int(1.5 * _est(tm_eff, th_eff)), 32 * 1024 * 1024),
                         vmem_budget))

    # v7x small-M (decode-ish): don't shard the M axis across both TensorCores,
    # each core would re-stream the full W1/W2 over the shared HBM.
    # TODO(synk): better v7x fix is splitting the H axis across cores and
    # merging the two f32 partials via VMEM_SHARED; not implemented here.
    m_sem = "parallel"
    if gen == "v7x" and M_pad < 2 * 768:
        m_sem = "arbitrary"

    kernel = _make_mlp_kernel(gelu_dtype, use_scratch)
    scratch_shapes = ([pltpu.VMEM((tm_eff, C), jnp.float32)]
                      if use_scratch else [])

    out = pl.pallas_call(
        kernel,
        out_shape=jax.ShapeDtypeStruct((M_pad, C), out_dtype),
        grid_spec=pltpu.PrefetchScalarGridSpec(
            num_scalar_prefetch=0,
            grid=grid,
            in_specs=[
                pl.BlockSpec((tm_eff, C), lambda i, k: (i, 0)),   # x rows (resident over k)
                pl.BlockSpec((C, th_eff), lambda i, k: (0, k)),   # W1 column chunk
                pl.BlockSpec((1, th_eff), lambda i, k: (0, k)),   # b1 chunk
                pl.BlockSpec((th_eff, C), lambda i, k: (k, 0)),   # W2 row chunk
                pl.BlockSpec((1, C), lambda i, k: (0, 0)),        # b2 (grid-invariant)
                # TODO(synk): pipeline_mode=pl.Buffered(3) on the W1/W2 streams
                # if profiling shows exposed weight DMA (most likely on v5e).
            ],
            out_specs=pl.BlockSpec((tm_eff, C), lambda i, k: (i, 0)),
            scratch_shapes=scratch_shapes,
        ),
        compiler_params=pltpu.CompilerParams(
            dimension_semantics=(m_sem, "arbitrary"),
            vmem_limit_bytes=vmem_limit),
    )(x2, w1c, b1_2, w2c, b2_2)

    return out[:M].reshape(B, T, C)


def _reference(x, w1, b1, w2, b2):
    h = x @ w1 + b1
    h = 0.5 * h * (1.0 + jnp.tanh(_GELU_C * (h + 0.044715 * h ** 3)))
    return h @ w2 + b2


if __name__ == "__main__":
    key = jax.random.PRNGKey(0)

    def make_case(kb, B, T, C):
        H = 4 * C
        kx, k1, k2, k3, k4 = jax.random.split(kb, 5)
        bound1 = 1.0 / math.sqrt(C)
        bound2 = 1.0 / math.sqrt(H)
        x = jax.random.normal(kx, (B, T, C), dtype=jnp.float32)
        w1 = jax.random.uniform(k1, (C, H), jnp.float32, -bound1, bound1)
        b1 = jax.random.uniform(k2, (H,), jnp.float32, -bound1, bound1)
        w2 = jax.random.uniform(k3, (H, C), jnp.float32, -bound2, bound2)
        b2 = jax.random.uniform(k4, (C,), jnp.float32, -bound2, bound2)
        return x, w1, b1, w2, b2

    ka, kb = jax.random.split(key)

    # Case 1: tiny GPT-ish config (n_embd=32 -> hidden=128), exact f32 path
    # (f32 GELU, accumulate-in-output, single hidden chunk).
    x, w1, b1, w2, b2 = make_case(ka, 2, 8, 32)
    y = mlp_forward(x, w1, b1, w2, b2, compute_dtype=jnp.float32)
    jax.block_until_ready(y)
    y_ref = _reference(x, w1, b1, w2, b2)
    assert y.shape == (2, 8, 32)
    assert jnp.allclose(y, y_ref, atol=1e-5, rtol=1e-5), "f32 mismatch vs reference"

    # Case 2: exercises M tiling / row padding and the streamed-H reduction on
    # the bf16 MXU path (bf16 GELU on v6e/v7x, f32 on v5e).
    x, w1, b1, w2, b2 = make_case(kb, 2, 300, 256)
    y = mlp_forward(x, w1, b1, w2, b2, compute_dtype=jnp.bfloat16)
    jax.block_until_ready(y)
    y_ref = _reference(x, w1, b1, w2, b2)
    assert y.shape == (2, 300, 256)
    assert jnp.allclose(y, y_ref, atol=5e-2, rtol=5e-2), "bf16 mismatch vs reference"

    print("KERNEL_OK")
</pallas_src>

<mosaic_0001>
module attributes {stable_mosaic.version = 11 : i64} {
  func.func @kernel(%arg0: i32, %arg1: i32, %arg2: memref<16x32xf32, #tpu.memory_space<vmem>>, %arg3: memref<32x128xf32, #tpu.memory_space<vmem>>, %arg4: memref<1x128xf32, #tpu.memory_space<vmem>>, %arg5: memref<128x32xf32, #tpu.memory_space<vmem>>, %arg6: memref<1x32xf32, #tpu.memory_space<vmem>>, %arg7: memref<16x32xf32, #tpu.memory_space<vmem>>) attributes {dimension_semantics = [#tpu.dimension_semantics<parallel>, #tpu.dimension_semantics<arbitrary>], iteration_bounds = array<i64: 1, 1>, scalar_prefetch = 0 : i64, scratch_operands = 0 : i64, tpu.core_type = #tpu.core_type<tc>, window_params = [{transform_indices = @transform_0, window_bounds = array<i64: 16, 32>}, {transform_indices = @transform_1, window_bounds = array<i64: 32, 128>}, {transform_indices = @transform_2, window_bounds = array<i64: 1, 128>}, {transform_indices = @transform_3, window_bounds = array<i64: 128, 32>}, {pipeline_mode = #tpu.pipeline_mode<synchronous>, transform_indices = @transform_4, window_bounds = array<i64: 1, 32>}, {transform_indices = @transform_5, window_bounds = array<i64: 16, 32>}]} {
    %c0 = arith.constant 0 : index
    %c0_0 = arith.constant 0 : index
    %0 = vector.load %arg2[%c0, %c0_0] : memref<16x32xf32, #tpu.memory_space<vmem>>, vector<16x32xf32>
    %c0_1 = arith.constant 0 : index
    %c0_2 = arith.constant 0 : index
    %1 = vector.load %arg3[%c0_1, %c0_2] : memref<32x128xf32, #tpu.memory_space<vmem>>, vector<32x128xf32>
    %cst = arith.constant dense<0.000000e+00> : vector<16x128xf32>
    %2 = tpu.matmul %0, %1, %cst {dimension_numbers = #tpu.dot_dimension_numbers<[1], [0], [0], [1], [0, 0, 1, 1], [], []>} : vector<16x32xf32>, vector<32x128xf32>, vector<16x128xf32> -> vector<16x128xf32>
    %c0_3 = arith.constant 0 : index
    %c0_4 = arith.constant 0 : index
    %3 = vector.load %arg4[%c0_3, %c0_4] : memref<1x128xf32, #tpu.memory_space<vmem>>, vector<1x128xf32>
    %4 = vector.broadcast %3 : vector<1x128xf32> to vector<16x128xf32>
    %5 = arith.addf %2, %4 : vector<16x128xf32>
    %cst_5 = arith.constant 5.000000e-01 : f32
    %6 = vector.broadcast %cst_5 : f32 to vector<16x128xf32>
    %7 = arith.mulf %6, %5 : vector<16x128xf32>
    %8 = arith.mulf %5, %5 : vector<16x128xf32>
    %9 = arith.mulf %8, %5 : vector<16x128xf32>
    %cst_6 = arith.constant 4.471500e-02 : f32
    %10 = vector.broadcast %cst_6 : f32 to vector<16x128xf32>
    %11 = arith.mulf %10, %9 : vector<16x128xf32>
    %12 = arith.addf %5, %11 : vector<16x128xf32>
    %cst_7 = arith.constant 0.797884583 : f32
    %13 = vector.broadcast %cst_7 : f32 to vector<16x128xf32>
    %14 = arith.mulf %13, %12 : vector<16x128xf32>
    %15 = math.tanh %14 : vector<16x128xf32>
    %cst_8 = arith.constant 1.000000e+00 : f32
    %16 = vector.broadcast %cst_8 : f32 to vector<16x128xf32>
    %17 = arith.addf %16, %15 : vector<16x128xf32>
    %18 = arith.mulf %7, %17 : vector<16x128xf32>
    %c0_9 = arith.constant 0 : index
    %c0_10 = arith.constant 0 : index
    %19 = vector.load %arg5[%c0_9, %c0_10] : memref<128x32xf32, #tpu.memory_space<vmem>>, vector<128x32xf32>
    %cst_11 = arith.constant dense<0.000000e+00> : vector<16x32xf32>
    %20 = tpu.matmul %18, %19, %cst_11 {dimension_numbers = #tpu.dot_dimension_numbers<[1], [0], [0], [1], [0, 0, 1, 1], [], []>} : vector<16x128xf32>, vector<128x32xf32>, vector<16x32xf32> -> vector<16x32xf32>
    %c0_i32 = arith.constant 0 : i32
    %21 = arith.cmpi eq, %arg1, %c0_i32 : i32
    %22 = arith.extui %21 : i1 to i32
    %c0_i32_12 = arith.constant 0 : i32
    %23 = arith.cmpi ne, %22, %c0_i32_12 : i32
    scf.if %23 {
      %c0_17 = arith.constant 0 : index
      %c0_18 = arith.constant 0 : index
      %30 = vector.load %arg7[%c0_17, %c0_18] : memref<16x32xf32, #tpu.memory_space<vmem>>, vector<16x32xf32>
      tpu.vector_store %arg7[%c0_17, %c0_18], %20 {strides = array<i32>} : memref<16x32xf32, #tpu.memory_space<vmem>>, vector<16x32xf32>,
    } else {
    }
    %c0_i32_13 = arith.constant 0 : i32
    %24 = arith.cmpi sgt, %arg1, %c0_i32_13 : i32
    %25 = arith.extui %24 : i1 to i32
    %c0_i32_14 = arith.constant 0 : i32
    %26 = arith.cmpi ne, %25, %c0_i32_14 : i32
    scf.if %26 {
      %c0_17 = arith.constant 0 : index
      %c0_18 = arith.constant 0 : index
      %30 = vector.load %arg7[%c0_17, %c0_18] : memref<16x32xf32, #tpu.memory_space<vmem>>, vector<16x32xf32>
      %31 = arith.addf %30, %20 : vector<16x32xf32>
      %c0_19 = arith.constant 0 : index
      %c0_20 = arith.constant 0 : index
      %32 = vector.load %arg7[%c0_19, %c0_20] : memref<16x32xf32, #tpu.memory_space<vmem>>, vector<16x32xf32>
      tpu.vector_store %arg7[%c0_19, %c0_20], %31 {strides = array<i32>} : memref<16x32xf32, #tpu.memory_space<vmem>>, vector<16x32xf32>,
    } else {
    }
    %c0_i32_15 = arith.constant 0 : i32
    %27 = arith.cmpi eq, %arg1, %c0_i32_15 : i32
    %28 = arith.extui %27 : i1 to i32
    %c0_i32_16 = arith.constant 0 : i32
    %29 = arith.cmpi ne, %28, %c0_i32_16 : i32
    scf.if %29 {
      %c0_17 = arith.constant 0 : index
      %c0_18 = arith.constant 0 : index
      %30 = vector.load %arg7[%c0_17, %c0_18] : memref<16x32xf32, #tpu.memory_space<vmem>>, vector<16x32xf32>
      %c0_19 = arith.constant 0 : index
      %c0_20 = arith.constant 0 : index
      %31 = vector.load %arg6[%c0_19, %c0_20] : memref<1x32xf32, #tpu.memory_space<vmem>>, vector<1x32xf32>
      %32 = vector.broadcast %31 : vector<1x32xf32> to vector<16x32xf32>
      %33 = arith.addf %30, %32 : vector<16x32xf32>
      %c0_21 = arith.constant 0 : index
      %c0_22 = arith.constant 0 : index
      %34 = vector.load %arg7[%c0_21, %c0_22] : memref<16x32xf32, #tpu.memory_space<vmem>>, vector<16x32xf32>
      tpu.vector_store %arg7[%c0_21, %c0_22], %33 {strides = array<i32>} : memref<16x32xf32, #tpu.memory_space<vmem>>, vector<16x32xf32>,
    } else {
    }
    return
  }
  func.func @transform_0(%arg0: i32, %arg1: i32) -> (i32, i32) {
    %c0_i32 = arith.constant 0 : i32
    %c0_i32_0 = arith.constant 0 : i32
    return %arg0, %c0_i32 : i32, i32
  }
  func.func @transform_1(%arg0: i32, %arg1: i32) -> (i32, i32) {
    %c0_i32 = arith.constant 0 : i32
    %c0_i32_0 = arith.constant 0 : i32
    return %c0_i32, %arg1 : i32, i32
  }
  func.func @transform_2(%arg0: i32, %arg1: i32) -> (i32, i32) {
    %c0_i32 = arith.constant 0 : i32
    %c0_i32_0 = arith.constant 0 : i32
    return %c0_i32, %arg1 : i32, i32
  }
  func.func @transform_3(%arg0: i32, %arg1: i32) -> (i32, i32) {
    %c0_i32 = arith.constant 0 : i32
    %c0_i32_0 = arith.constant 0 : i32
    return %arg1, %c0_i32 : i32, i32
  }
  func.func @transform_4(%arg0: i32, %arg1: i32) -> (i32, i32) {
    %c0_i32 = arith.constant 0 : i32
    %c0_i32_0 = arith.constant 0 : i32
    %c0_i32_1 = arith.constant 0 : i32
    return %c0_i32, %c0_i32_0 : i32, i32
  }
  func.func @transform_5(%arg0: i32, %arg1: i32) -> (i32, i32) {
    %c0_i32 = arith.constant 0 : i32
    %c0_i32_0 = arith.constant 0 : i32
    return %arg0, %c0_i32 : i32, i32
  }
}

</mosaic_0001>

<llo_original>
// kernel: tpu_custom_call.1
$region0: #{tpu_custom_call.1}
  #allocation0 [shape = 'u32[]', space=smem, size = 0x4, offset = 0x4, fixed_abs, tag = 'smem constant byte address 0x4 - core index']
  #allocation1 [shape = 'u32[144,128]{1,0:T(1,128)}', space=vmem, size = 0x12000, scoped, tag = 'internal scratch']
  %s0 = inlined_call_operand.vmem [shape: f32[16,32], index: 0, kind: input, shape index: {}]
  %s1 = inlined_call_operand.vmem [shape: f32[32,128], index: 1, kind: input, shape index: {}]
  %s2 = inlined_call_operand.vmem [shape: f32[1,128], index: 2, kind: input, shape index: {}]
  %s3 = inlined_call_operand.vmem [shape: f32[128,32], index: 3, kind: input, shape index: {}]
  %s4 = inlined_call_operand.vmem [shape: f32[1,32], index: 4, kind: input, shape index: {}]
  %s5 = inlined_call_operand.hbm [shape: f32[16,32], index: 5, kind: output, shape index: {}]
  %s6 = sld [smem:[#allocation0]]
  $region42: #{tpu_custom_call.1} parent=0
    _
  %s8 = ssub.s32 1, %s6
  %s9 = scalar_select 0, %s8, %s6
  $region1: #{tpu_custom_call.1} parent=0
    #allocation2 [shape = 'u8[8192]{0}', space=vmem, size = 0x2000, scoped, tag = 'output window, operand 0, single buffered']
    #allocation3 [shape = 's32[1]{0}', space=sflag, size = 0x4, scoped, tag = 'scoped memory for tpu_custom_call.1']
    %10 = vsyncpa [#allocation3], 0
    // Predicated region
    $region2: #{tpu_custom_call.1} parent=1 // pred_check
      _
    $region3: #{tpu_custom_call.1} parent=1 // pred_check_branch
      %12 = sbr.rel (0) target = $region5
    $region4: #{tpu_custom_call.1} parent=1 // pred_region
      _
    $region5: #{tpu_custom_call.1} parent=1 // pred_fallthru
      _
    // Predicated region
    $region6: #{tpu_custom_call.1} parent=1 // pred_check
      _
    $region7: #{tpu_custom_call.1} parent=1 // pred_check_branch
      %14 = sbr.rel (0) target = $region9
    $region8: #{tpu_custom_call.1} parent=1 // pred_region
      _
    $region9: #{tpu_custom_call.1} parent=1 // pred_fallthru
      _
    // Predicated region
    $region10: #{tpu_custom_call.1} parent=1 // pred_check
      _
    $region11: #{tpu_custom_call.1} parent=1 // pred_check_branch
      %16 = sbr.rel (0) target = $region13
    $region12: #{tpu_custom_call.1} parent=1 // pred_region
      _
    $region13: #{tpu_custom_call.1} parent=1 // pred_fallthru
      _
    // Predicated region
    $region14: #{tpu_custom_call.1} parent=1 // pred_check
      _
    $region15: #{tpu_custom_call.1} parent=1 // pred_check_branch
      %18 = sbr.rel (0) target = $region17
    $region16: #{tpu_custom_call.1} parent=1 // pred_region
      _
    $region17: #{tpu_custom_call.1} parent=1 // pred_fallthru
      _
    // Predicated region
    $region18: #{tpu_custom_call.1} parent=1 // pred_check
      _
    $region19: #{tpu_custom_call.1} parent=1 // pred_check_branch
      %20 = sbr.rel (0) target = $region21
    $region20: #{tpu_custom_call.1} parent=1 // pred_region
      _
    $region21: #{tpu_custom_call.1} parent=1 // pred_fallthru
      _
    %v21 = vld [vmem:[%s0] sm:$0xff]
    %v22 = vld [vmem:[%s0 + $0x8] sm:$0xff]
    %v23 = vld [vmem:[%s1] sm:$0xff]
    %v24 = vld [vmem:[%s1 + $0x8] sm:$0xff]
    %v25 = vld [vmem:[%s1 + $0x10] sm:$0xff]
    %v26 = vld [vmem:[%s1 + $0x18] sm:$0xff]
    %v27 = vld [vmem:[%s2] sm:$0x1]
    %v29 = vlaneseq
    %v30 = vshrl.u32 %v29, 7
    %v31 = vsub.s32 0, %v30
    %v32 = vrot.slane %v27, %v31
    %vm34 = vcmask 261120
    %v36 = vsel %vm34, %v21, 0
    %v39 = vsel %vm34, %v22, 0
    %41 = vmatprep.subr.mxu0 0.0
    %42 = vmatpush1.msra.mxu0 %v23
    %43 = vmatprep.subr.mxu0 0.0
    %44 = vmatpush1.msra.mxu0 %v24
    %45 = vmatprep.subr.mxu0 0.0
    %46 = vmatpush1.msra.mxu0 %v25
    %47 = vmatprep.subr.mxu0 0.0
    %48 = vmatpush1.msra.mxu0 %v26
    %49 = vmatprep.subr.mxu0 0.0
    %50 = vmatpush1.msra.mxu0 0.0
    %51 = vmatprep.subr.mxu0 0.0
    %52 = vmatpush1.msra.mxu0 0.0
    %53 = vmatprep.subr.mxu0 0.0
    %54 = vmatpush1.msra.mxu0 0.0
    %55 = vmatprep.subr.mxu0 0.0
    %56 = vmatpush1.msra.mxu0 0.0
    %57 = vmatprep.subr.mxu0 0.0
    %58 = vmatpush1.msra.mxu0 0.0
    %59 = vmatprep.subr.mxu0 0.0
    %60 = vmatpush1.msra.mxu0 0.0
    %61 = vmatprep.subr.mxu0 0.0
    %62 = vmatpush1.msra.mxu0 0.0
    %63 = vmatprep.subr.mxu0 0.0
    %64 = vmatpush1.msra.mxu0 0.0
    %65 = vmatprep.subr.mxu0 0.0
    %66 = vmatpush1.msra.mxu0 0.0
    %67 = vmatprep.subr.mxu0 0.0
    %68 = vmatpush1.msra.mxu0 0.0
    %69 = vmatprep.subr.mxu0 0.0
    %70 = vmatpush1.msra.mxu0 0.0
    %71 = vmatprep.subr.mxu0 0.0
    %72 = vmatpush1.msra.mxu0 0.0
    %73 = vmatprep.subr.mxu0 0.0
    %74 = vmatpush1.msra.mxu0 0.0
    %75 = vmatprep.subr.mxu0 0.0
    %76 = vmatpush1.msra.mxu0 0.0
    %77 = vmatprep.subr.mxu0 0.0
    %78 = vmatpush1.msra.mxu0 0.0
    %79 = vmatprep.subr.mxu0 0.0
    %80 = vmatpush1.msra.mxu0 0.0
    %81 = vmatprep.subr.mxu0 0.0
    %82 = vmatpush1.msra.mxu0 0.0
    %83 = vmatprep.subr.mxu0 0.0
    %84 = vmatpush1.msra.mxu0 0.0
    %85 = vmatprep.subr.mxu0 0.0
    %86 = vmatpush1.msra.mxu0 0.0
    %87 = vmatprep.subr.mxu0 0.0
    %88 = vmatpush1.msra.mxu0 0.0
    %89 = vmatprep.subr.mxu0 0.0
    %90 = vmatpush1.msra.mxu0 0.0
    %91 = vmatprep.subr.mxu0 0.0
    %92 = vmatpush1.msra.mxu0 0.0
    %93 = vmatprep.subr.mxu0 0.0
    %94 = vmatpush1.msra.mxu0 0.0
    %95 = vmatprep.subr.mxu0 0.0
    %96 = vmatpush1.msra.mxu0 0.0
    %97 = vmatprep.subr.mxu0 0.0
    %98 = vmatpush1.msra.mxu0 0.0
    %99 = vmatprep.subr.mxu0 0.0
    %100 = vmatpush1.msra.mxu0 0.0
    %101 = vmatprep.subr.mxu0 0.0
    %102 = vmatpush1.msra.mxu0 0.0
    %103 = vmatprep.subr.mxu0 0.0
    %104 = vmatpush1.msra.mxu0 0.0
    %105 = vmatprep.mubr.f32.mxu0 0.0
    %106 = vmatmul.mubr.f32.gmra.mrb[0].mxu0 %v36
    %v107 = vpop.f32.mrb[0].mxu0
    %v108 = vadd.f32 %v32, %v107
    %v109 = vpop.f32.mrb[0].mxu0
    %110 = vmatprep.mubr.f32.mxu0 0.0
    %111 = vmatmul.mubr.f32.gmra.mrb[0].mxu0 %v39
    %v112 = vpop.f32.mrb[0].mxu0
    %v113 = vadd.f32 %v32, %v112
    %v114 = vpop.f32.mrb[0].mxu0
    %115 = vdwg.mxu0
    %v116 = vmul.f32 %v108, 0.5
    %v117 = vmul.f32 %v113, 0.5
    %v118 = vmul.f32 %v108, %v108
    %v119 = vmul.f32 %v113, %v113
    %v120 = vmul.f32 %v118, %v108
    %v121 = vmul.f32 %v119, %v113
    %v122 = vmul.f32 %v120, 0.044715
    %v123 = vmul.f32 %v121, 0.044715
    %v124 = vadd.f32 %v108, %v122
    %v125 = vadd.f32 %v113, %v123
    %v126 = vmul.f32 %v124, 0.7978846
    %v127 = vmul.f32 %v125, 0.7978846
    %v128 = vtanh.pop %v126
    %v129 = vtanh.pop %v127
    %v130 = vadd.f32 %v128, 1.0
    %v131 = vadd.f32 %v129, 1.0
    %v132 = vmul.f32 %v116, %v130
    %v133 = vmul.f32 %v117, %v131
    %v134 = vld [vmem:[%s3] sm:$0xff]
    %v135 = vld [vmem:[%s3 + $0x8] sm:$0xff]
    %v136 = vld [vmem:[%s3 + $0x10] sm:$0xff]
    %v137 = vld [vmem:[%s3 + $0x18] sm:$0xff]
    %v138 = vld [vmem:[%s3 + $0x20] sm:$0xff]
    %v139 = vld [vmem:[%s3 + $0x28] sm:$0xff]
    %v140 = vld [vmem:[%s3 + $0x30] sm:$0xff]
    %v141 = vld [vmem:[%s3 + $0x38] sm:$0xff]
    %v142 = vld [vmem:[%s3 + $0x40] sm:$0xff]
    %v143 = vld [vmem:[%s3 + $0x48] sm:$0xff]
    %v144 = vld [vmem:[%s3 + $0x50] sm:$0xff]
    %v145 = vld [vmem:[%s3 + $0x58] sm:$0xff]
    %v146 = vld [vmem:[%s3 + $0x60] sm:$0xff]
    %v147 = vld [vmem:[%s3 + $0x68] sm:$0xff]
    %v148 = vld [vmem:[%s3 + $0x70] sm:$0xff]
    %v149 = vld [vmem:[%s3 + $0x78] sm:$0xff]
    %150 = vmatprep.subr.mxu0 0.0
    %151 = vmatpush1.msra.mxu0 %v134
    %152 = vmatprep.subr.mxu0 0.0
    %153 = vmatpush1.msra.mxu0 %v135
    %154 = vmatprep.subr.mxu0 0.0
    %155 = vmatpush1.msra.mxu0 %v136
    %156 = vmatprep.subr.mxu0 0.0
    %157 = vmatpush1.msra.mxu0 %v137
    %158 = vmatprep.subr.mxu0 0.0
    %159 = vmatpush1.msra.mxu0 %v138
    %160 = vmatprep.subr.mxu0 0.0
    %161 = vmatpush1.msra.mxu0 %v139
    %162 = vmatprep.subr.mxu0 0.0
    %163 = vmatpush1.msra.mxu0 %v140
    %164 = vmatprep.subr.mxu0 0.0
    %165 = vmatpush1.msra.mxu0 %v141
    %166 = vmatprep.subr.mxu0 0.0
    %167 = vmatpush1.msra.mxu0 %v142
    %168 = vmatprep.subr.mxu0 0.0
    %169 = vmatpush1.msra.mxu0 %v143
    %170 = vmatprep.subr.mxu0 0.0
    %171 = vmatpush1.msra.mxu0 %v144
    %172 = vmatprep.subr.mxu0 0.0
    %173 = vmatpush1.msra.mxu0 %v145
    %174 = vmatprep.subr.mxu0 0.0
    %175 = vmatpush1.msra.mxu0 %v146
    %176 = vmatprep.subr.mxu0 0.0
    %177 = vmatpush1.msra.mxu0 %v147
    %178 = vmatprep.subr.mxu0 0.0
    %179 = vmatpush1.msra.mxu0 %v148
    %180 = vmatprep.subr.mxu0 0.0
    %181 = vmatpush1.msra.mxu0 %v149
    %182 = vmatprep.subr.mxu0 0.0
    %183 = vmatpush1.msra.mxu0 0.0
    %184 = vmatprep.subr.mxu0 0.0
    %185 = vmatpush1.msra.mxu0 0.0
    %186 = vmatprep.subr.mxu0 0.0
    %187 = vmatpush1.msra.mxu0 0.0
    %188 = vmatprep.subr.mxu0 0.0
    %189 = vmatpush1.msra.mxu0 0.0
    %190 = vmatprep.subr.mxu0 0.0
    %191 = vmatpush1.msra.mxu0 0.0
    %192 = vmatprep.subr.mxu0 0.0
    %193 = vmatpush1.msra.mxu0 0.0
    %194 = vmatprep.subr.mxu0 0.0
    %195 = vmatpush1.msra.mxu0 0.0
    %196 = vmatprep.subr.mxu0 0.0
    %197 = vmatpush1.msra.mxu0 0.0
    %198 = vmatprep.subr.mxu0 0.0
    %199 = vmatpush1.msra.mxu0 0.0
    %200 = vmatprep.subr.mxu0 0.0
    %201 = vmatpush1.msra.mxu0 0.0
    %202 = vmatprep.subr.mxu0 0.0
    %203 = vmatpush1.msra.mxu0 0.0
    %204 = vmatprep.subr.mxu0 0.0
    %205 = vmatpush1.msra.mxu0 0.0
    %206 = vmatprep.subr.mxu0 0.0
    %207 = vmatpush1.msra.mxu0 0.0
    %208 = vmatprep.subr.mxu0 0.0
    %209 = vmatpush1.msra.mxu0 0.0
    %210 = vmatprep.subr.mxu0 0.0
    %211 = vmatpush1.msra.mxu0 0.0
    %212 = vmatprep.subr.mxu0 0.0
    %213 = vmatpush1.msra.mxu0 0.0
    %214 = vmatprep.mubr.f32.mxu0 0.0
    %215 = vmatmul.mubr.f32.gmra.mrb[0].mxu0 %v132
    %v216 = vpop.f32.mrb[0].mxu0
    %v217 = vadd.f32 0.0, %v216
    %v218 = vpop.f32.mrb[0].mxu0
    %219 = vmatprep.mubr.f32.mxu0 0.0
    %220 = vmatmul.mubr.f32.gmra.mrb[0].mxu0 %v133
    %v221 = vpop.f32.mrb[0].mxu0
    %v222 = vadd.f32 0.0, %v221
    %v223 = vpop.f32.mrb[0].mxu0
    %224 = vdwg.mxu0
    %p225 = scmp.eq.s32.totalorder 0, 0
    // Predicated region
    $region22: #{tpu_custom_call.1} parent=1 // pred_check
      %p226 = pneg %p225
    $region23: #{tpu_custom_call.1} parent=1 // pred_check_branch
      %228 = sbr.rel (%p226) target = $region25
    $region24: #{tpu_custom_call.1} parent=1 // pred_region
      %229 = vst.msk [vmem:[#allocation2] sm:$0xff] %vm34, %v217
      %230 = vst.msk [vmem:[#allocation2 + $0x8] sm:$0xff] %vm34, %v222
    $region25: #{tpu_custom_call.1} parent=1 // pred_fallthru
      _
    %p231 = scmp.gt.s32.totalorder 0, 0
    // Predicated region
    $region26: #{tpu_custom_call.1} parent=1 // pred_check
      %p232 = pneg %p231
    $region27: #{tpu_custom_call.1} parent=1 // pred_check_branch
      %234 = sbr.rel (%p232) target = $region29
    $region28: #{tpu_custom_call.1} parent=1 // pred_region
      %v235 = vld [vmem:[#allocation2] sm:$0xff]
      %v236 = vld [vmem:[#allocation2 + $0x8] sm:$0xff]
      %v237 = vadd.f32 %v235, %v217
      %v238 = vadd.f32 %v236, %v222
      %239 = vst.msk [vmem:[#allocation2] sm:$0xff] %vm34, %v237
      %240 = vst.msk [vmem:[#allocation2 + $0x8] sm:$0xff] %vm34, %v238
    $region29: #{tpu_custom_call.1} parent=1 // pred_fallthru
      _
    // Predicated region
    $region30: #{tpu_custom_call.1} parent=1 // pred_check
      %p241 = pneg %p225
    $region31: #{tpu_custom_call.1} parent=1 // pred_check_branch
      %243 = sbr.rel (%p241) target = $region33
    $region32: #{tpu_custom_call.1} parent=1 // pred_region
      %v244 = vld [vmem:[#allocation2] sm:$0xff]
      %v245 = vld [vmem:[#allocation2 + $0x8] sm:$0xff]
      %v246 = vld [vmem:[%s4] sm:$0x1]
      %v248 = vlaneseq
      %v249 = vshrl.u32 %v248, 7
      %v250 = vsub.s32 0, %v249
      %v251 = vrot.slane %v246, %v250
      %v253 = vadd.f32 %v244, %v251
      %v254 = vadd.f32 %v245, %v251
      %255 = vst.msk [vmem:[#allocation2] sm:$0xff] %vm34, %v253
      %256 = vst.msk [vmem:[#allocation2 + $0x8] sm:$0xff] %vm34, %v254
    $region33: #{tpu_custom_call.1} parent=1 // pred_fallthru
      _
    // Predicated region
    $region34: #{tpu_custom_call.1} parent=1 // pred_check
      _
    $region35: #{tpu_custom_call.1} parent=1 // pred_check_branch
      %258 = sbr.rel (0) target = $region37
    $region36: #{tpu_custom_call.1} parent=1 // pred_region
      %s260 = ssub.s32 256, 256
      %261 = vsyncadd [#allocation3], %s260
      %s262 = sshll.u32 [#allocation2], 4
      %s263 = int_to_ptr.vmem [resolvable:$true] %s262
      %268 = dma.vmem_to_hbm [thread:$0]  %s263, 256, %s5, [#allocation3], 128, 128, 8
    $region37: #{tpu_custom_call.1} parent=1 // pred_fallthru
      _
    // Predicated region
    $region38: #{tpu_custom_call.1} parent=1 // pred_check
      _
    $region39: #{tpu_custom_call.1} parent=1 // pred_check_branch
      %270 = sbr.rel (0) target = $region41
    $region40: #{tpu_custom_call.1} parent=1 // pred_region
      %271 = dma.done [#allocation3], 256
    $region41: #{tpu_custom_call.1} parent=1 // pred_fallthru
      _
    %272 = vsyncpa [#allocation3], 1

</llo_original>
